<compile_context>
chip_gen: v6e
topology: v6e:2x2x1
jax: 0.10.0
libtpu: 0.0.40
codegen_flags: <defaults>
</compile_context>

<pallas_src>
import functools

import jax
import jax.numpy as jnp
from jax.experimental import pallas as pl
from jax.experimental.pallas import tpu as pltpu

LN_EPS = 1e-5  # PyTorch nn.LayerNorm default


# ----------------------------------------------------------------------------
# Main fused kernel: one grid step handles G batch elements (G*H heads total).
# ----------------------------------------------------------------------------
def _fused_kernel(pbd_ref, x_ref, w_in_ref, b_in_ref, g_in_ref, be_in_ref,
                  g_out_ref, be_out_ref, w_head_ref, b_head_ref,
                  out_ref, z_ref, *, G, H, N, d_model):
    # ---------------- node-feature path (all groups/heads stacked) ----------
    x = x_ref[0]                                          # (G*H*N, 2*d_in)
    y = (jnp.dot(x, w_in_ref[...], preferred_element_type=jnp.float32)
         + b_in_ref[...])                                 # (G*H*N, d_model)
    # LayerNorm(d_model)
    mu = jnp.mean(y, axis=-1, keepdims=True)
    var = jnp.mean((y - mu) ** 2, axis=-1, keepdims=True)
    y = (y - mu) * jax.lax.rsqrt(var + LN_EPS) * g_in_ref[...] + be_in_ref[...]
    # dropout(relu(.)) -> relu only (eval mode)
    y = jnp.maximum(y, 0.0)

    # Block-diagonal permutation: both per-head products are single matmuls.
    pbd = pbd_ref[0]                                      # (G*H*N, G*H*N)
    sf = jnp.dot(pbd, y, preferred_element_type=jnp.float32)            # P @ y
    # P^T @ sf without materializing the transpose (contract row index of P)
    ob = jax.lax.dot_general(pbd, sf, (((0,), (0,)), ((), ())),
                             preferred_element_type=jnp.float32)        # (G*H*N, d_model)

    # z = transpose(1,2).flatten(-2,-1): write head slabs straight into a
    # lane-dense VMEM scratch (no jnp.concatenate / relayout copies).
    for g in range(G):
        for h in range(H):
            z_ref[g * N:(g + 1) * N, h * d_model:(h + 1) * d_model] = \
                ob[(g * H + h) * N:(g * H + h + 1) * N, :]

    # output LayerNorm(H*d_model) + classification head
    z = z_ref[...]                                        # (G*N, H*d_model)
    mu = jnp.mean(z, axis=-1, keepdims=True)
    var = jnp.mean((z - mu) ** 2, axis=-1, keepdims=True)
    zn = (z - mu) * jax.lax.rsqrt(var + LN_EPS) * g_out_ref[...] + be_out_ref[...]
    res = (jnp.dot(zn, w_head_ref[...], preferred_element_type=jnp.float32)
           + b_head_ref[...])                             # (G*N, nclass)
    for g in range(G):
        out_ref[g] = res[g * N:(g + 1) * N, :]


# ----------------------------------------------------------------------------
# Optional adjacency permutation kernel: adj_p[b,h,e] = P_h @ A[h,e] @ P_h^T.
# Split out of the forward (it is dead code for nlayers==0 and is not part of
# the module's return value).  E is batched along the MXU M dimension; one
# (E*N, N) slab store per head.
# ----------------------------------------------------------------------------
def _adj_perm_kernel(perm_ref, adj_ref, out_ref, *, H, E, N):
    for h in range(H):
        p = perm_ref[0, h]                                # (N, N)
        a_st = adj_ref[0, h].reshape(E * N, N)            # stack E along MXU rows
        # A @ P^T with E stacked, no explicit transpose (contract on P columns)
        apt = jax.lax.dot_general(a_st, p, (((1,), (1,)), ((), ())),
                                  preferred_element_type=jnp.float32)   # (E*N, N)
        res = jnp.concatenate(
            [jnp.dot(p, apt[e * N:(e + 1) * N, :],
                     preferred_element_type=jnp.float32) for e in range(E)],
            axis=0)                                       # (E*N, N)
        out_ref[0, h] = res                               # one store per head


# ----------------------------------------------------------------------------
# Wrappers
# ----------------------------------------------------------------------------
def rescocn_forward(perm, adj, features, appd, params, *, batch_per_step=1):
    """Forward pass of ResCoCNModuleN (nlayers=0, nblocks=0, eval mode).

    `adj` is accepted for API parity with the PyTorch module but does not
    influence the output when nlayers==0 (use `permute_adjacency` if the
    permuted adjacency is needed).

    batch_per_step: batch elements per grid step.  1 -> grid=(B,) "parallel"
    (one element per TensorCore on v7x); B -> single grid step (lowest fixed
    overhead on 1-TC v5e/v6e).
    """
    del adj  # unused on the nlayers==0 path
    B, H, N, _ = perm.shape
    d_in = features.shape[-1]
    d_model = params["w_in"].shape[1]
    nclass = params["w_head"].shape[1]

    G = batch_per_step
    assert B % G == 0
    nb = B // G
    GHN = G * H * N

    # concat(features, appd) once, wrapper-side (single tiny XLA op), flattened
    # so each grid step sees one row-stacked (G*H*N, 2*d_in) slab.
    x = jnp.concatenate([features, appd], axis=-1).reshape(nb, GHN, 2 * d_in)

    # Block-diagonal permutation over the G*H (batch, head) blocks of one step.
    p = perm.reshape(nb, G * H, N, N)
    eye = jnp.eye(G * H, dtype=perm.dtype)
    pbd = (p[:, :, None, :, :] * eye[None, :, :, None, None])       # (nb,GH,GH,N,N)
    pbd = pbd.transpose(0, 1, 3, 2, 4).reshape(nb, GHN, GHN)

    kernel = functools.partial(_fused_kernel, G=G, H=H, N=N, d_model=d_model)
    out = pl.pallas_call(
        kernel,
        out_shape=jax.ShapeDtypeStruct((B, N, nclass), jnp.float32),
        grid=(nb,),
        in_specs=[
            pl.BlockSpec((1, GHN, GHN), lambda s: (s, 0, 0)),        # perm (block-diag)
            pl.BlockSpec((1, GHN, 2 * d_in), lambda s: (s, 0, 0)),   # concat features
            pl.BlockSpec((2 * d_in, d_model), lambda s: (0, 0)),     # w_in (full)
            pl.BlockSpec((1, d_model), lambda s: (0, 0)),            # b_in
            pl.BlockSpec((1, d_model), lambda s: (0, 0)),            # ln_in_g
            pl.BlockSpec((1, d_model), lambda s: (0, 0)),            # ln_in_b
            pl.BlockSpec((1, H * d_model), lambda s: (0, 0)),        # ln_out_g
            pl.BlockSpec((1, H * d_model), lambda s: (0, 0)),        # ln_out_b
            pl.BlockSpec((H * d_model, nclass), lambda s: (0, 0)),   # w_head
            pl.BlockSpec((1, nclass), lambda s: (0, 0)),             # b_head
        ],
        out_specs=pl.BlockSpec((G, N, nclass), lambda s: (s, 0, 0)),
        scratch_shapes=[pltpu.VMEM((G * N, H * d_model), jnp.float32)],
        compiler_params=pltpu.CompilerParams(
            dimension_semantics=("parallel",)),
    )(pbd, x, params["w_in"], params["b_in"],
      params["ln_in_g"], params["ln_in_b"],
      params["ln_out_g"], params["ln_out_b"],
      params["w_head"], params["b_head"])
    return out


def permute_adjacency(perm, adj):
    """adj_p[b,h,e] = P_h @ A[b,h,e] @ P_h^T (only needed when nlayers > 0)."""
    B, H, N, _ = perm.shape
    E = adj.shape[2]
    kernel = functools.partial(_adj_perm_kernel, H=H, E=E, N=N)
    out = pl.pallas_call(
        kernel,
        out_shape=jax.ShapeDtypeStruct((B, H, E * N, N), jnp.float32),
        grid=(B,),
        in_specs=[
            pl.BlockSpec((1, H, N, N), lambda b: (b, 0, 0, 0)),
            pl.BlockSpec((1, H, E, N, N), lambda b: (b, 0, 0, 0, 0)),
        ],
        out_specs=pl.BlockSpec((1, H, E * N, N), lambda b: (b, 0, 0, 0)),
        compiler_params=pltpu.CompilerParams(
            dimension_semantics=("parallel",)),
    )(perm, adj)
    return out.reshape(B, H, E, N, N)


# ----------------------------------------------------------------------------
# Pure-JAX references (for correctness checks)
# ----------------------------------------------------------------------------
def rescocn_forward_ref(perm, features, appd, params):
    B, H, N, _ = perm.shape
    d_model = params["w_in"].shape[1]
    x = jnp.concatenate([features, appd], axis=-1)
    y = x @ params["w_in"] + params["b_in"]
    mu = jnp.mean(y, -1, keepdims=True)
    var = jnp.mean((y - mu) ** 2, -1, keepdims=True)
    y = (y - mu) * jax.lax.rsqrt(var + LN_EPS) * params["ln_in_g"] + params["ln_in_b"]
    y = jnp.maximum(y, 0.0)
    sf = jnp.einsum("bhij,bhjd->bhid", perm, y)
    fo = jnp.einsum("bhji,bhjd->bhid", perm, sf)
    z = jnp.transpose(fo, (0, 2, 1, 3)).reshape(B, N, H * d_model)
    mu = jnp.mean(z, -1, keepdims=True)
    var = jnp.mean((z - mu) ** 2, -1, keepdims=True)
    zn = (z - mu) * jax.lax.rsqrt(var + LN_EPS) * params["ln_out_g"] + params["ln_out_b"]
    return zn @ params["w_head"] + params["b_head"]


def permute_adjacency_ref(perm, adj):
    return jnp.einsum("bhij,bhejk,bhlk->bheil", perm, adj, perm)


# ----------------------------------------------------------------------------
# Main
# ----------------------------------------------------------------------------
if __name__ == "__main__":
    # Module hyper-params (small, consistent with ResCoCNModuleN __init__)
    B, H, N = 2, 2, 16
    d_in, d_ein, d_model, nclass = 4, 2, 32, 3
    # nlayers = 0, nblocks = 0, app_adj = True, res = True, dropout (eval) = id

    key = jax.random.PRNGKey(0)
    keys = jax.random.split(key, 8)

    perm = jax.random.normal(keys[0], (B, H, N, N), jnp.float32)
    adj = jax.random.normal(keys[1], (B, H, d_ein, N, N), jnp.float32)
    features = jax.random.normal(keys[2], (B, H, N, d_in), jnp.float32)
    appd = jax.random.normal(keys[3], (B, H, N, d_in), jnp.float32)

    params = {
        # ff_in: Linear(d_in * 2, d_model)
        "w_in": 0.1 * jax.random.normal(keys[4], (2 * d_in, d_model), jnp.float32),
        "b_in": 0.1 * jax.random.normal(keys[5], (1, d_model), jnp.float32),
        # input_norm: LayerNorm(d_model)
        "ln_in_g": jnp.ones((1, d_model), jnp.float32),
        "ln_in_b": jnp.zeros((1, d_model), jnp.float32),
        # output_norm: LayerNorm(d_model * h)
        "ln_out_g": jnp.ones((1, H * d_model), jnp.float32),
        "ln_out_b": jnp.zeros((1, H * d_model), jnp.float32),
        # ff_head: Linear(d_model * h, nclass)
        "w_head": 0.1 * jax.random.normal(keys[6], (H * d_model, nclass), jnp.float32),
        "b_head": 0.1 * jax.random.normal(keys[7], (1, nclass), jnp.float32),
    }

    out_ref = rescocn_forward_ref(perm, features, appd, params)

    # Path for 2-TC parts (v7x): one batch element per grid step, "parallel".
    out1 = rescocn_forward(perm, adj, features, appd, params, batch_per_step=1)
    jax.block_until_ready(out1)
    assert out1.shape == (B, N, nclass)
    assert jnp.allclose(out1, out_ref, rtol=1e-4, atol=1e-4)

    # Path for 1-TC parts (v5e/v6e): whole batch in a single grid step.
    out2 = rescocn_forward(perm, adj, features, appd, params, batch_per_step=B)
    jax.block_until_ready(out2)
    assert jnp.allclose(out2, out_ref, rtol=1e-4, atol=1e-4)

    # Optional (gated) adjacency permutation — not part of the module's output
    # for nlayers==0, provided for completeness of the forward semantics.
    adj_p = permute_adjacency(perm, adj)
    jax.block_until_ready(adj_p)
    assert adj_p.shape == (B, H, d_ein, N, N)
    assert jnp.allclose(adj_p, permute_adjacency_ref(perm, adj), rtol=1e-4, atol=1e-4)

    print("KERNEL_OK")
</pallas_src>

<mosaic_0001>
module attributes {stable_mosaic.version = 11 : i64} {
  func.func @_fused_kernel(%arg0: i32, %arg1: memref<1x32x32xf32, #tpu.memory_space<vmem>>, %arg2: memref<1x32x8xf32, #tpu.memory_space<vmem>>, %arg3: memref<8x32xf32, #tpu.memory_space<vmem>>, %arg4: memref<1x32xf32, #tpu.memory_space<vmem>>, %arg5: memref<1x32xf32, #tpu.memory_space<vmem>>, %arg6: memref<1x32xf32, #tpu.memory_space<vmem>>, %arg7: memref<1x64xf32, #tpu.memory_space<vmem>>, %arg8: memref<1x64xf32, #tpu.memory_space<vmem>>, %arg9: memref<64x3xf32, #tpu.memory_space<vmem>>, %arg10: memref<1x3xf32, #tpu.memory_space<vmem>>, %arg11: memref<1x16x3xf32, #tpu.memory_space<vmem>>, %arg12: memref<16x64xf32, #tpu.memory_space<vmem>>) attributes {dimension_semantics = [#tpu.dimension_semantics<parallel>], iteration_bounds = array<i64: 2>, scalar_prefetch = 0 : i64, scratch_operands = 1 : i64, tpu.core_type = #tpu.core_type<tc>, window_params = [{transform_indices = @transform_0, window_bounds = array<i64: 1, 32, 32>}, {transform_indices = @transform_1, window_bounds = array<i64: 1, 32, 8>}, {pipeline_mode = #tpu.pipeline_mode<synchronous>, transform_indices = @transform_2, window_bounds = array<i64: 8, 32>}, {pipeline_mode = #tpu.pipeline_mode<synchronous>, transform_indices = @transform_3, window_bounds = array<i64: 1, 32>}, {pipeline_mode = #tpu.pipeline_mode<synchronous>, transform_indices = @transform_4, window_bounds = array<i64: 1, 32>}, {pipeline_mode = #tpu.pipeline_mode<synchronous>, transform_indices = @transform_5, window_bounds = array<i64: 1, 32>}, {pipeline_mode = #tpu.pipeline_mode<synchronous>, transform_indices = @transform_6, window_bounds = array<i64: 1, 64>}, {pipeline_mode = #tpu.pipeline_mode<synchronous>, transform_indices = @transform_7, window_bounds = array<i64: 1, 64>}, {pipeline_mode = #tpu.pipeline_mode<synchronous>, transform_indices = @transform_8, window_bounds = array<i64: 64, 3>}, {pipeline_mode = #tpu.pipeline_mode<synchronous>, transform_indices = @transform_9, window_bounds = array<i64: 1, 3>}, {transform_indices = @transform_10, window_bounds = array<i64: 1, 16, 3>}]} {
    %c0 = arith.constant 0 : index
    %c0_0 = arith.constant 0 : index
    %c0_1 = arith.constant 0 : index
    %0 = vector.load %arg2[%c0, %c0_0, %c0_1] : memref<1x32x8xf32, #tpu.memory_space<vmem>>, vector<1x32x8xf32>
    %1 = vector.shape_cast %0 : vector<1x32x8xf32> to vector<32x8xf32>
    %c0_2 = arith.constant 0 : index
    %c0_3 = arith.constant 0 : index
    %2 = vector.load %arg3[%c0_2, %c0_3] : memref<8x32xf32, #tpu.memory_space<vmem>>, vector<8x32xf32>
    %cst = arith.constant dense<0.000000e+00> : vector<32x32xf32>
    %3 = tpu.matmul %1, %2, %cst {dimension_numbers = #tpu.dot_dimension_numbers<[1], [0], [0], [1], [0, 0, 1, 1], [], []>} : vector<32x8xf32>, vector<8x32xf32>, vector<32x32xf32> -> vector<32x32xf32>
    %c0_4 = arith.constant 0 : index
    %c0_5 = arith.constant 0 : index
    %4 = vector.load %arg4[%c0_4, %c0_5] : memref<1x32xf32, #tpu.memory_space<vmem>>, vector<1x32xf32>
    %5 = vector.broadcast %4 : vector<1x32xf32> to vector<32x32xf32>
    %6 = arith.addf %3, %5 : vector<32x32xf32>
    %cst_6 = arith.constant dense<0.000000e+00> : vector<32xf32>
    %7 = vector.multi_reduction <add>, %6, %cst_6 [1] : vector<32x32xf32> to vector<32xf32>
    %8 = vector.shape_cast %7 : vector<32xf32> to vector<32x1xf32>
    %cst_7 = arith.constant 3.200000e+01 : f32
    %9 = vector.broadcast %cst_7 : f32 to vector<32x1xf32>
    %10 = arith.divf %8, %9 : vector<32x1xf32>
    %11 = vector.broadcast %10 : vector<32x1xf32> to vector<32x32xf32>
    %12 = arith.subf %6, %11 : vector<32x32xf32>
    %13 = arith.mulf %12, %12 : vector<32x32xf32>
    %cst_8 = arith.constant dense<0.000000e+00> : vector<32xf32>
    %14 = vector.multi_reduction <add>, %13, %cst_8 [1] : vector<32x32xf32> to vector<32xf32>
    %15 = vector.shape_cast %14 : vector<32xf32> to vector<32x1xf32>
    %cst_9 = arith.constant 3.200000e+01 : f32
    %16 = vector.broadcast %cst_9 : f32 to vector<32x1xf32>
    %17 = arith.divf %15, %16 : vector<32x1xf32>
    %18 = vector.broadcast %10 : vector<32x1xf32> to vector<32x32xf32>
    %19 = arith.subf %6, %18 : vector<32x32xf32>
    %cst_10 = arith.constant 9.99999974E-6 : f32
    %20 = vector.broadcast %cst_10 : f32 to vector<32x1xf32>
    %21 = arith.addf %17, %20 : vector<32x1xf32>
    %22 = math.rsqrt %21 : vector<32x1xf32>
    %23 = vector.broadcast %22 : vector<32x1xf32> to vector<32x32xf32>
    %24 = arith.mulf %19, %23 : vector<32x32xf32>
    %c0_11 = arith.constant 0 : index
    %c0_12 = arith.constant 0 : index
    %25 = vector.load %arg5[%c0_11, %c0_12] : memref<1x32xf32, #tpu.memory_space<vmem>>, vector<1x32xf32>
    %26 = vector.broadcast %25 : vector<1x32xf32> to vector<32x32xf32>
    %27 = arith.mulf %24, %26 : vector<32x32xf32>
    %c0_13 = arith.constant 0 : index
    %c0_14 = arith.constant 0 : index
    %28 = vector.load %arg6[%c0_13, %c0_14] : memref<1x32xf32, #tpu.memory_space<vmem>>, vector<1x32xf32>
    %29 = vector.broadcast %28 : vector<1x32xf32> to vector<32x32xf32>
    %30 = arith.addf %27, %29 : vector<32x32xf32>
    %cst_15 = arith.constant 0.000000e+00 : f32
    %31 = vector.broadcast %cst_15 : f32 to vector<32x32xf32>
    %32 = arith.maximumf %30, %31 : vector<32x32xf32>
    %c0_16 = arith.constant 0 : index
    %c0_17 = arith.constant 0 : index
    %c0_18 = arith.constant 0 : index
    %33 = vector.load %arg1[%c0_16, %c0_17, %c0_18] : memref<1x32x32xf32, #tpu.memory_space<vmem>>, vector<1x32x32xf32>
    %34 = vector.shape_cast %33 : vector<1x32x32xf32> to vector<32x32xf32>
    %cst_19 = arith.constant dense<0.000000e+00> : vector<32x32xf32>
    %35 = tpu.matmul %34, %32, %cst_19 {dimension_numbers = #tpu.dot_dimension_numbers<[1], [0], [0], [1], [0, 0, 1, 1], [], []>} : vector<32x32xf32>, vector<32x32xf32>, vector<32x32xf32> -> vector<32x32xf32>
    %cst_20 = arith.constant dense<0.000000e+00> : vector<32x32xf32>
    %36 = tpu.matmul %34, %35, %cst_20 {dimension_numbers = #tpu.dot_dimension_numbers<[0], [0], [1], [1], [0, 1, 1, 1], [], []>} : vector<32x32xf32>, vector<32x32xf32>, vector<32x32xf32> -> vector<32x32xf32>
    %37 = vector.extract_strided_slice %36 {offsets = [0, 0], sizes = [16, 32], strides = [1, 1]} : vector<32x32xf32> to vector<16x32xf32>
    %c0_21 = arith.constant 0 : index
    %c0_22 = arith.constant 0 : index
    %38 = vector.load %arg12[%c0_21, %c0_22] : memref<16x64xf32, #tpu.memory_space<vmem>>, vector<16x32xf32>
    tpu.vector_store %arg12[%c0_21, %c0_22], %37 {strides = array<i32>} : memref<16x64xf32, #tpu.memory_space<vmem>>, vector<16x32xf32>,
    %39 = vector.extract_strided_slice %36 {offsets = [16, 0], sizes = [16, 32], strides = [1, 1]} : vector<32x32xf32> to vector<16x32xf32>
    %c0_23 = arith.constant 0 : index
    %c32 = arith.constant 32 : index
    %40 = vector.load %arg12[%c0_23, %c32] : memref<16x64xf32, #tpu.memory_space<vmem>>, vector<16x32xf32>
    tpu.vector_store %arg12[%c0_23, %c32], %39 {strides = array<i32>} : memref<16x64xf32, #tpu.memory_space<vmem>>, vector<16x32xf32>,
    %c0_24 = arith.constant 0 : index
    %c0_25 = arith.constant 0 : index
    %41 = vector.load %arg12[%c0_24, %c0_25] : memref<16x64xf32, #tpu.memory_space<vmem>>, vector<16x64xf32>
    %cst_26 = arith.constant dense<0.000000e+00> : vector<16xf32>
    %42 = vector.multi_reduction <add>, %41, %cst_26 [1] : vector<16x64xf32> to vector<16xf32>
    %43 = vector.shape_cast %42 : vector<16xf32> to vector<16x1xf32>
    %cst_27 = arith.constant 6.400000e+01 : f32
    %44 = vector.broadcast %cst_27 : f32 to vector<16x1xf32>
    %45 = arith.divf %43, %44 : vector<16x1xf32>
    %46 = vector.broadcast %45 : vector<16x1xf32> to vector<16x64xf32>
    %47 = arith.subf %41, %46 : vector<16x64xf32>
    %48 = arith.mulf %47, %47 : vector<16x64xf32>
    %cst_28 = arith.constant dense<0.000000e+00> : vector<16xf32>
    %49 = vector.multi_reduction <add>, %48, %cst_28 [1] : vector<16x64xf32> to vector<16xf32>
    %50 = vector.shape_cast %49 : vector<16xf32> to vector<16x1xf32>
    %cst_29 = arith.constant 6.400000e+01 : f32
    %51 = vector.broadcast %cst_29 : f32 to vector<16x1xf32>
    %52 = arith.divf %50, %51 : vector<16x1xf32>
    %53 = vector.broadcast %45 : vector<16x1xf32> to vector<16x64xf32>
    %54 = arith.subf %41, %53 : vector<16x64xf32>
    %cst_30 = arith.constant 9.99999974E-6 : f32
    %55 = vector.broadcast %cst_30 : f32 to vector<16x1xf32>
    %56 = arith.addf %52, %55 : vector<16x1xf32>
    %57 = math.rsqrt %56 : vector<16x1xf32>
    %58 = vector.broadcast %57 : vector<16x1xf32> to vector<16x64xf32>
    %59 = arith.mulf %54, %58 : vector<16x64xf32>
    %c0_31 = arith.constant 0 : index
    %c0_32 = arith.constant 0 : index
    %60 = vector.load %arg7[%c0_31, %c0_32] : memref<1x64xf32, #tpu.memory_space<vmem>>, vector<1x64xf32>
    %61 = vector.broadcast %60 : vector<1x64xf32> to vector<16x64xf32>
    %62 = arith.mulf %59, %61 : vector<16x64xf32>
    %c0_33 = arith.constant 0 : index
    %c0_34 = arith.constant 0 : index
    %63 = vector.load %arg8[%c0_33, %c0_34] : memref<1x64xf32, #tpu.memory_space<vmem>>, vector<1x64xf32>
    %64 = vector.broadcast %63 : vector<1x64xf32> to vector<16x64xf32>
    %65 = arith.addf %62, %64 : vector<16x64xf32>
    %c0_35 = arith.constant 0 : index
    %c0_36 = arith.constant 0 : index
    %66 = vector.load %arg9[%c0_35, %c0_36] : memref<64x3xf32, #tpu.memory_space<vmem>>, vector<64x3xf32>
    %cst_37 = arith.constant dense<0.000000e+00> : vector<16x3xf32>
    %67 = tpu.matmul %65, %66, %cst_37 {dimension_numbers = #tpu.dot_dimension_numbers<[1], [0], [0], [1], [0, 0, 1, 1], [], []>} : vector<16x64xf32>, vector<64x3xf32>, vector<16x3xf32> -> vector<16x3xf32>
    %c0_38 = arith.constant 0 : index
    %c0_39 = arith.constant 0 : index
    %68 = vector.load %arg10[%c0_38, %c0_39] : memref<1x3xf32, #tpu.memory_space<vmem>>, vector<1x3xf32>
    %69 = vector.broadcast %68 : vector<1x3xf32> to vector<16x3xf32>
    %70 = arith.addf %67, %69 : vector<16x3xf32>
    %c0_40 = arith.constant 0 : index
    %c0_41 = arith.constant 0 : index
    %c0_42 = arith.constant 0 : index
    %71 = vector.load %arg11[%c0_40, %c0_41, %c0_42] : memref<1x16x3xf32, #tpu.memory_space<vmem>>, vector<1x16x3xf32>
    %72 = vector.shape_cast %71 : vector<1x16x3xf32> to vector<16x3xf32>
    %73 = vector.shape_cast %70 : vector<16x3xf32> to vector<1x16x3xf32>
    tpu.vector_store %arg11[%c0_40, %c0_41, %c0_42], %73 {strides = array<i32>} : memref<1x16x3xf32, #tpu.memory_space<vmem>>, vector<1x16x3xf32>,
    return
  }
  func.func @transform_0(%arg0: i32) -> (i32, i32, i32) {
    %c0_i32 = arith.constant 0 : i32
    %c0_i32_0 = arith.constant 0 : i32
    %c0_i32_1 = arith.constant 0 : i32
    return %arg0, %c0_i32, %c0_i32_0 : i32, i32, i32
  }
  func.func @transform_1(%arg0: i32) -> (i32, i32, i32) {
    %c0_i32 = arith.constant 0 : i32
    %c0_i32_0 = arith.constant 0 : i32
    %c0_i32_1 = arith.constant 0 : i32
    return %arg0, %c0_i32, %c0_i32_0 : i32, i32, i32
  }
  func.func @transform_2(%arg0: i32) -> (i32, i32) {
    %c0_i32 = arith.constant 0 : i32
    %c0_i32_0 = arith.constant 0 : i32
    %c0_i32_1 = arith.constant 0 : i32
    return %c0_i32, %c0_i32_0 : i32, i32
  }
  func.func @transform_3(%arg0: i32) -> (i32, i32) {
    %c0_i32 = arith.constant 0 : i32
    %c0_i32_0 = arith.constant 0 : i32
    %c0_i32_1 = arith.constant 0 : i32
    return %c0_i32, %c0_i32_0 : i32, i32
  }
  func.func @transform_4(%arg0: i32) -> (i32, i32) {
    %c0_i32 = arith.constant 0 : i32
    %c0_i32_0 = arith.constant 0 : i32
    %c0_i32_1 = arith.constant 0 : i32
    return %c0_i32, %c0_i32_0 : i32, i32
  }
  func.func @transform_5(%arg0: i32) -> (i32, i32) {
    %c0_i32 = arith.constant 0 : i32
    %c0_i32_0 = arith.constant 0 : i32
    %c0_i32_1 = arith.constant 0 : i32
    return %c0_i32, %c0_i32_0 : i32, i32
  }
  func.func @transform_6(%arg0: i32) -> (i32, i32) {
    %c0_i32 = arith.constant 0 : i32
    %c0_i32_0 = arith.constant 0 : i32
    %c0_i32_1 = arith.constant 0 : i32
    return %c0_i32, %c0_i32_0 : i32, i32
  }
  func.func @transform_7(%arg0: i32) -> (i32, i32) {
    %c0_i32 = arith.constant 0 : i32
    %c0_i32_0 = arith.constant 0 : i32
    %c0_i32_1 = arith.constant 0 : i32
    return %c0_i32, %c0_i32_0 : i32, i32
  }
  func.func @transform_8(%arg0: i32) -> (i32, i32) {
    %c0_i32 = arith.constant 0 : i32
    %c0_i32_0 = arith.constant 0 : i32
    %c0_i32_1 = arith.constant 0 : i32
    return %c0_i32, %c0_i32_0 : i32, i32
  }
  func.func @transform_9(%arg0: i32) -> (i32, i32) {
    %c0_i32 = arith.constant 0 : i32
    %c0_i32_0 = arith.constant 0 : i32
    %c0_i32_1 = arith.constant 0 : i32
    return %c0_i32, %c0_i32_0 : i32, i32
  }
  func.func @transform_10(%arg0: i32) -> (i32, i32, i32) {
    %c0_i32 = arith.constant 0 : i32
    %c0_i32_0 = arith.constant 0 : i32
    %c0_i32_1 = arith.constant 0 : i32
    return %arg0, %c0_i32, %c0_i32_0 : i32, i32, i32
  }
}

</mosaic_0001>

<llo_original>
// kernel: tpu_custom_call.1
$region0: #{tpu_custom_call.1}
  #allocation0 [shape = 'u32[]', space=smem, size = 0x4, offset = 0x4, fixed_abs, tag = 'smem constant byte address 0x4 - core index']
  #allocation1 [shape = 'u32[144,128]{1,0:T(1,128)}', space=vmem, size = 0x12000, scoped, tag = 'internal scratch']
  #allocation2 [shape = 'f32[16,64]{1,0:T(8,128)}', space=vmem, size = 0x2000, scoped, tag = 'scratch operand']
  %s0 = inlined_call_operand.vmem [shape: f32[2,32,32], index: 0, kind: input, shape index: {}]
  %s1 = inlined_call_operand.vmem [shape: f32[2,32,8], index: 1, kind: input, shape index: {}]
  %s2 = inlined_call_operand.vmem [shape: f32[8,32], index: 2, kind: input, shape index: {}]
  %s3 = inlined_call_operand.vmem [shape: f32[1,32], index: 3, kind: input, shape index: {}]
  %s4 = inlined_call_operand.vmem [shape: f32[1,32], index: 4, kind: input, shape index: {}]
  %s5 = inlined_call_operand.vmem [shape: f32[1,32], index: 5, kind: input, shape index: {}]
  %s6 = inlined_call_operand.vmem [shape: f32[1,64], index: 6, kind: input, shape index: {}]
  %s7 = inlined_call_operand.vmem [shape: f32[1,64], index: 7, kind: input, shape index: {}]
  %s8 = inlined_call_operand.vmem [shape: f32[64,3], index: 8, kind: input, shape index: {}]
  %s9 = inlined_call_operand.vmem [shape: f32[1,3], index: 9, kind: input, shape index: {}]
  %s10 = inlined_call_operand.vmem [shape: f32[2,16,3], index: 10, kind: output, shape index: {}]
  %s11 = sld [smem:[#allocation0]]
  $region73: #{tpu_custom_call.1} parent=0
    _
  %s13 = ssub.s32 1, %s11
  %s14 = scalar_select 0, %s13, %s11
  loop: start=0, step=1, limit=4
  $region2: #{tpu_custom_call.1} parent=0 // loop_pre_header
    _
  $region3: #{tpu_custom_call.1} parent=0 // loop_header
    %s16 = sphi 0, %s20
    %p17 = scmp.ge.s32.totalorder %s16, 4
    %s26 = sphi 0, %s28
    %s29 = sphi 0, %s26
    %s30 = sphi 0, %s29
    %s46 = sphi 0, %s30
    %s52 = sphi 0, %s54
    %s55 = sphi 0, %s52
    %s56 = sphi 0, %s55
    %s72 = sphi 0, %s56
    %s76 = sphi 0, %s76
    %s78 = sphi 0, %s76
    %s79 = sphi 0, %s78
    %s93 = sphi 0, %s79
    %s97 = sphi 0, %s97
    %s99 = sphi 0, %s97
    %s100 = sphi 0, %s99
    %s114 = sphi 0, %s100
    %s118 = sphi 0, %s118
    %s120 = sphi 0, %s118
    %s121 = sphi 0, %s120
    %s135 = sphi 0, %s121
    %s139 = sphi 0, %s139
    %s141 = sphi 0, %s139
    %s142 = sphi 0, %s141
    %s156 = sphi 0, %s142
    %s160 = sphi 0, %s160
    %s162 = sphi 0, %s160
    %s163 = sphi 0, %s162
    %s177 = sphi 0, %s163
    %s181 = sphi 0, %s181
    %s183 = sphi 0, %s181
    %s184 = sphi 0, %s183
    %s198 = sphi 0, %s184
    %s202 = sphi 0, %s202
    %s204 = sphi 0, %s202
    %s205 = sphi 0, %s204
    %s219 = sphi 0, %s205
    %s223 = sphi 0, %s223
    %s225 = sphi 0, %s223
    %s226 = sphi 0, %s225
    %s240 = sphi 0, %s226
    %s246 = sphi 0, %s248
    %s249 = sphi 0, %s246
    %s250 = sphi 0, %s249
    %s266 = sphi 0, %s250
  $region4: #{tpu_custom_call.1} parent=0 // loop_header_branch
    %19 = sbr.rel (%p17) target = $region8
  $region5: #{tpu_custom_call.1} parent=0 // loop_body
    %s21 = ssub.s32 %s16, 1
    %s22 = ssub.s32 %s16, 2
    %s23 = sadd.s32 %s16, 1
    %s24 = ssub.s32 %s16, %s23
    %p25 = scmp.eq.s32.totalorder %s24, 0
    %s27 = sadd.s32 %s26, 1
    %s28 = scalar_select %p25, %s26, %s27
    %p31 = pneg %p25
    %p32 = scmp.eq.s32.totalorder %s16, 1
    %p33 = por %p31, %p32
    %p34 = scmp.ne.s32.totalorder %s26, %s29
    %p35 = scmp.eq.s32.totalorder %s16, 0
    %p36 = por %p34, %p35
    %p37 = scmp.ne.s32.totalorder %s26, %s29
    %p38 = scmp.eq.s32.totalorder %s21, 1
    %p39 = por %p37, %p38
    %p40 = scmp.ne.s32.totalorder %s29, %s30
    %p41 = scmp.eq.s32.totalorder %s21, 0
    %p42 = por %p40, %p41
    %p43 = scmp.ne.s32.totalorder %s29, %s30
    %p44 = scmp.eq.s32.totalorder %s22, 1
    %p45 = por %p43, %p44
    %p47 = scmp.ne.s32.totalorder %s30, %s46
    %p48 = scmp.eq.s32.totalorder %s22, 0
    %p49 = por %p47, %p48
    %s50 = ssub.s32 %s16, %s23
    %p51 = scmp.eq.s32.totalorder %s50, 0
    %s53 = sadd.s32 %s52, 1
    %s54 = scalar_select %p51, %s52, %s53
    %p57 = pneg %p51
    %p58 = scmp.eq.s32.totalorder %s16, 1
    %p59 = por %p57, %p58
    %p60 = scmp.ne.s32.totalorder %s52, %s55
    %p61 = scmp.eq.s32.totalorder %s16, 0
    %p62 = por %p60, %p61
    %p63 = scmp.ne.s32.totalorder %s52, %s55
    %p64 = scmp.eq.s32.totalorder %s21, 1
    %p65 = por %p63, %p64
    %p66 = scmp.ne.s32.totalorder %s55, %s56
    %p67 = scmp.eq.s32.totalorder %s21, 0
    %p68 = por %p66, %p67
    %p69 = scmp.ne.s32.totalorder %s55, %s56
    %p70 = scmp.eq.s32.totalorder %s22, 1
    %p71 = por %p69, %p70
    %p73 = scmp.ne.s32.totalorder %s56, %s72
    %p74 = scmp.eq.s32.totalorder %s22, 0
    %p75 = por %p73, %p74
    %s77 = sadd.s32 %s76, 1
    %p80 = scmp.eq.s32.totalorder %s16, 1
    %p81 = scmp.ne.s32.totalorder %s76, %s78
    %p82 = scmp.eq.s32.totalorder %s16, 0
    %p83 = por %p81, %p82
    %p84 = scmp.ne.s32.totalorder %s76, %s78
    %p85 = scmp.eq.s32.totalorder %s21, 1
    %p86 = por %p84, %p85
    %p87 = scmp.ne.s32.totalorder %s78, %s79
    %p88 = scmp.eq.s32.totalorder %s21, 0
    %p89 = por %p87, %p88
    %p90 = scmp.ne.s32.totalorder %s78, %s79
    %p91 = scmp.eq.s32.totalorder %s22, 1
    %p92 = por %p90, %p91
    %p94 = scmp.ne.s32.totalorder %s79, %s93
    %p95 = scmp.eq.s32.totalorder %s22, 0
    %p96 = por %p94, %p95
    %s98 = sadd.s32 %s97, 1
    %p101 = scmp.eq.s32.totalorder %s16, 1
    %p102 = scmp.ne.s32.totalorder %s97, %s99
    %p103 = scmp.eq.s32.totalorder %s16, 0
    %p104 = por %p102, %p103
    %p105 = scmp.ne.s32.totalorder %s97, %s99
    %p106 = scmp.eq.s32.totalorder %s21, 1
    %p107 = por %p105, %p106
    %p108 = scmp.ne.s32.totalorder %s99, %s100
    %p109 = scmp.eq.s32.totalorder %s21, 0
    %p110 = por %p108, %p109
    %p111 = scmp.ne.s32.totalorder %s99, %s100
    %p112 = scmp.eq.s32.totalorder %s22, 1
    %p113 = por %p111, %p112
    %p115 = scmp.ne.s32.totalorder %s100, %s114
    %p116 = scmp.eq.s32.totalorder %s22, 0
    %p117 = por %p115, %p116
    %s119 = sadd.s32 %s118, 1
    %p122 = scmp.eq.s32.totalorder %s16, 1
    %p123 = scmp.ne.s32.totalorder %s118, %s120
    %p124 = scmp.eq.s32.totalorder %s16, 0
    %p125 = por %p123, %p124
    %p126 = scmp.ne.s32.totalorder %s118, %s120
    %p127 = scmp.eq.s32.totalorder %s21, 1
    %p128 = por %p126, %p127
    %p129 = scmp.ne.s32.totalorder %s120, %s121
    %p130 = scmp.eq.s32.totalorder %s21, 0
    %p131 = por %p129, %p130
    %p132 = scmp.ne.s32.totalorder %s120, %s121
    %p133 = scmp.eq.s32.totalorder %s22, 1
    %p134 = por %p132, %p133
    %p136 = scmp.ne.s32.totalorder %s121, %s135
    %p137 = scmp.eq.s32.totalorder %s22, 0
    %p138 = por %p136, %p137
    %s140 = sadd.s32 %s139, 1
    %p143 = scmp.eq.s32.totalorder %s16, 1
    %p144 = scmp.ne.s32.totalorder %s139, %s141
    %p145 = scmp.eq.s32.totalorder %s16, 0
    %p146 = por %p144, %p145
    %p147 = scmp.ne.s32.totalorder %s139, %s141
    %p148 = scmp.eq.s32.totalorder %s21, 1
    %p149 = por %p147, %p148
    %p150 = scmp.ne.s32.totalorder %s141, %s142
    %p151 = scmp.eq.s32.totalorder %s21, 0
    %p152 = por %p150, %p151
    %p153 = scmp.ne.s32.totalorder %s141, %s142
    %p154 = scmp.eq.s32.totalorder %s22, 1
    %p155 = por %p153, %p154
    %p157 = scmp.ne.s32.totalorder %s142, %s156
    %p158 = scmp.eq.s32.totalorder %s22, 0
    %p159 = por %p157, %p158
    %s161 = sadd.s32 %s160, 1
    %p164 = scmp.eq.s32.totalorder %s16, 1
    %p165 = scmp.ne.s32.totalorder %s160, %s162
    %p166 = scmp.eq.s32.totalorder %s16, 0
    %p167 = por %p165, %p166
    %p168 = scmp.ne.s32.totalorder %s160, %s162
    %p169 = scmp.eq.s32.totalorder %s21, 1
    %p170 = por %p168, %p169
    %p171 = scmp.ne.s32.totalorder %s162, %s163
    %p172 = scmp.eq.s32.totalorder %s21, 0
    %p173 = por %p171, %p172
    %p174 = scmp.ne.s32.totalorder %s162, %s163
    %p175 = scmp.eq.s32.totalorder %s22, 1
    %p176 = por %p174, %p175
    %p178 = scmp.ne.s32.totalorder %s163, %s177
    %p179 = scmp.eq.s32.totalorder %s22, 0
    %p180 = por %p178, %p179
    %s182 = sadd.s32 %s181, 1
    %p185 = scmp.eq.s32.totalorder %s16, 1
    %p186 = scmp.ne.s32.totalorder %s181, %s183
    %p187 = scmp.eq.s32.totalorder %s16, 0
    %p188 = por %p186, %p187
    %p189 = scmp.ne.s32.totalorder %s181, %s183
    %p190 = scmp.eq.s32.totalorder %s21, 1
    %p191 = por %p189, %p190
    %p192 = scmp.ne.s32.totalorder %s183, %s184
    %p193 = scmp.eq.s32.totalorder %s21, 0
    %p194 = por %p192, %p193
    %p195 = scmp.ne.s32.totalorder %s183, %s184
    %p196 = scmp.eq.s32.totalorder %s22, 1
    %p197 = por %p195, %p196
    %p199 = scmp.ne.s32.totalorder %s184, %s198
    %p200 = scmp.eq.s32.totalorder %s22, 0
    %p201 = por %p199, %p200
    %s203 = sadd.s32 %s202, 1
    %p206 = scmp.eq.s32.totalorder %s16, 1
    %p207 = scmp.ne.s32.totalorder %s202, %s204
    %p208 = scmp.eq.s32.totalorder %s16, 0
    %p209 = por %p207, %p208
    %p210 = scmp.ne.s32.totalorder %s202, %s204
    %p211 = scmp.eq.s32.totalorder %s21, 1
    %p212 = por %p210, %p211
    %p213 = scmp.ne.s32.totalorder %s204, %s205
    %p214 = scmp.eq.s32.totalorder %s21, 0
    %p215 = por %p213, %p214
    %p216 = scmp.ne.s32.totalorder %s204, %s205
    %p217 = scmp.eq.s32.totalorder %s22, 1
    %p218 = por %p216, %p217
    %p220 = scmp.ne.s32.totalorder %s205, %s219
    %p221 = scmp.eq.s32.totalorder %s22, 0
    %p222 = por %p220, %p221
    %s224 = sadd.s32 %s223, 1
    %p227 = scmp.eq.s32.totalorder %s16, 1
    %p228 = scmp.ne.s32.totalorder %s223, %s225
    %p229 = scmp.eq.s32.totalorder %s16, 0
    %p230 = por %p228, %p229
    %p231 = scmp.ne.s32.totalorder %s223, %s225
    %p232 = scmp.eq.s32.totalorder %s21, 1
    %p233 = por %p231, %p232
    %p234 = scmp.ne.s32.totalorder %s225, %s226
    %p235 = scmp.eq.s32.totalorder %s21, 0
    %p236 = por %p234, %p235
    %p237 = scmp.ne.s32.totalorder %s225, %s226
    %p238 = scmp.eq.s32.totalorder %s22, 1
    %p239 = por %p237, %p238
    %p241 = scmp.ne.s32.totalorder %s226, %s240
    %p242 = scmp.eq.s32.totalorder %s22, 0
    %p243 = por %p241, %p242
    %s244 = ssub.s32 %s16, %s23
    %p245 = scmp.eq.s32.totalorder %s244, 0
    %s247 = sadd.s32 %s246, 1
    %s248 = scalar_select %p245, %s246, %s247
    %p251 = pneg %p245
    %p252 = scmp.eq.s32.totalorder %s16, 1
    %p253 = por %p251, %p252
    %p254 = scmp.ne.s32.totalorder %s246, %s249
    %p255 = scmp.eq.s32.totalorder %s16, 0
    %p256 = por %p254, %p255
    %p257 = scmp.ne.s32.totalorder %s246, %s249
    %p258 = scmp.eq.s32.totalorder %s21, 1
    %p259 = por %p257, %p258
    %p260 = scmp.ne.s32.totalorder %s249, %s250
    %p261 = scmp.eq.s32.totalorder %s21, 0
    %p262 = por %p260, %p261
    %p263 = scmp.ne.s32.totalorder %s249, %s250
    %p264 = scmp.eq.s32.totalorder %s22, 1
    %p265 = por %p263, %p264
    %p267 = scmp.ne.s32.totalorder %s250, %s266
    %p268 = scmp.eq.s32.totalorder %s22, 0
    %p269 = por %p267, %p268
    %p270 = scmp.le.s32.totalorder 1, %s16
    %p271 = scmp.lt.s32.totalorder %s16, 3
    %p272 = pnand %p270, %p271
    %p273 = pneg %p272
    // Predicated region
    $region9: #{tpu_custom_call.1} parent=5 // pred_check
      _
    $region10: #{tpu_custom_call.1} parent=5 // pred_check_branch
      %275 = sbr.rel (%p272) target = $region12
    $region11: #{tpu_custom_call.1} parent=5 // pred_region
      %s276 = ssub.s32 %s16, 1
      // Predicated region
      $region13: #{tpu_custom_call.1} parent=11 // pred_check
        %p277 = pneg %p89
      $region14: #{tpu_custom_call.1} parent=11 // pred_check_branch
        %279 = sbr.rel (%p277) target = $region16
      $region15: #{tpu_custom_call.1} parent=11 // pred_region
        _
      $region16: #{tpu_custom_call.1} parent=11 // pred_fallthru
        _
      // Predicated region
      $region17: #{tpu_custom_call.1} parent=11 // pred_check
        %p280 = pneg %p110
      $region18: #{tpu_custom_call.1} parent=11 // pred_check_branch
        %282 = sbr.rel (%p280) target = $region20
      $region19: #{tpu_custom_call.1} parent=11 // pred_region
        _
      $region20: #{tpu_custom_call.1} parent=11 // pred_fallthru
        _
      // Predicated region
      $region21: #{tpu_custom_call.1} parent=11 // pred_check
        %p283 = pneg %p131
      $region22: #{tpu_custom_call.1} parent=11 // pred_check_branch
        %285 = sbr.rel (%p283) target = $region24
      $region23: #{tpu_custom_call.1} parent=11 // pred_region
        _
      $region24: #{tpu_custom_call.1} parent=11 // pred_fallthru
        _
      // Predicated region
      $region25: #{tpu_custom_call.1} parent=11 // pred_check
        %p286 = pneg %p152
      $region26: #{tpu_custom_call.1} parent=11 // pred_check_branch
        %288 = sbr.rel (%p286) target = $region28
      $region27: #{tpu_custom_call.1} parent=11 // pred_region
        _
      $region28: #{tpu_custom_call.1} parent=11 // pred_fallthru
        _
      // Predicated region
      $region29: #{tpu_custom_call.1} parent=11 // pred_check
        %p289 = pneg %p173
      $region30: #{tpu_custom_call.1} parent=11 // pred_check_branch
        %291 = sbr.rel (%p289) target = $region32
      $region31: #{tpu_custom_call.1} parent=11 // pred_region
        _
      $region32: #{tpu_custom_call.1} parent=11 // pred_fallthru
        _
      // Predicated region
      $region33: #{tpu_custom_call.1} parent=11 // pred_check
        %p292 = pneg %p194
      $region34: #{tpu_custom_call.1} parent=11 // pred_check_branch
        %294 = sbr.rel (%p292) target = $region36
      $region35: #{tpu_custom_call.1} parent=11 // pred_region
        _
      $region36: #{tpu_custom_call.1} parent=11 // pred_fallthru
        _
      // Predicated region
      $region37: #{tpu_custom_call.1} parent=11 // pred_check
        %p295 = pneg %p215
      $region38: #{tpu_custom_call.1} parent=11 // pred_check_branch
        %297 = sbr.rel (%p295) target = $region40
      $region39: #{tpu_custom_call.1} parent=11 // pred_region
        _
      $region40: #{tpu_custom_call.1} parent=11 // pred_fallthru
        _
      // Predicated region
      $region41: #{tpu_custom_call.1} parent=11 // pred_check
        %p298 = pneg %p236
      $region42: #{tpu_custom_call.1} parent=11 // pred_check_branch
        %300 = sbr.rel (%p298) target = $region44
      $region43: #{tpu_custom_call.1} parent=11 // pred_region
        _
      $region44: #{tpu_custom_call.1} parent=11 // pred_fallthru
        _
    $region12: #{tpu_custom_call.1} parent=5 // pred_fallthru
      _
    %p301 = scmp.lt.s32.totalorder %s16, 2
    // Predicated region
    $region45: #{tpu_custom_call.1} parent=5 // pred_check
      %p302 = pneg %p301
    $region46: #{tpu_custom_call.1} parent=5 // pred_check_branch
      %304 = sbr.rel (%p302) target = $region48
    $region47: #{tpu_custom_call.1} parent=5 // pred_region
      // Predicated region
      $region49: #{tpu_custom_call.1} parent=47 // pred_check
        %p305 = pneg %p36
      $region50: #{tpu_custom_call.1} parent=47 // pred_check_branch
        %307 = sbr.rel (%p305) target = $region52
      $region51: #{tpu_custom_call.1} parent=47 // pred_region
        %p308 = scmp.lt.s32.totalorder %s16, 1
        %s309 = scalar_select %p308, %s16, 1
        %s310 = smul.addr %s309, 4
        %s311 = smul.addr %s310, 8
        %s312 = scalar_lea.vmem %s0, %s311
      $region52: #{tpu_custom_call.1} parent=47 // pred_fallthru
        _
      // Predicated region
      $region53: #{tpu_custom_call.1} parent=47 // pred_check
        %p313 = pneg %p62
      $region54: #{tpu_custom_call.1} parent=47 // pred_check_branch
        %315 = sbr.rel (%p313) target = $region56
      $region55: #{tpu_custom_call.1} parent=47 // pred_region
        %p316 = scmp.lt.s32.totalorder %s16, 1
        %s317 = scalar_select %p316, %s16, 1
        %s318 = smul.addr %s317, 4
        %s319 = smul.addr %s318, 8
        %s320 = scalar_lea.vmem %s1, %s319
      $region56: #{tpu_custom_call.1} parent=47 // pred_fallthru
        _
    $region48: #{tpu_custom_call.1} parent=5 // pred_fallthru
      _
    %p321 = scmp.le.s32.totalorder 1, %s16
    %p322 = scmp.lt.s32.totalorder %s16, 3
    %p323 = pnand %p321, %p322
    %p324 = pneg %p323
    // Predicated region
    $region57: #{tpu_custom_call.1} parent=5 // pred_check
      _
    $region58: #{tpu_custom_call.1} parent=5 // pred_check_branch
      %326 = sbr.rel (%p323) target = $region60
    $region59: #{tpu_custom_call.1} parent=5 // pred_region
      %s327 = ssub.s32 %s16, 1
      %p328 = scmp.lt.s32.totalorder %s21, 1
      %s329 = scalar_select %p328, %s21, 1
      %s330 = smul.addr %s329, 4
      %s331 = smul.addr %s330, 8
      %s332 = scalar_lea.vmem %s0, %s331
      %p333 = pneg %p42
      %p334 = pneg %p39
      %p335 = scmp.lt.s32.totalorder %s21, 1
      %s336 = scalar_select %p335, %s21, 1
      %s337 = smul.addr %s336, 4
      %s338 = smul.addr %s337, 8
      %s339 = scalar_lea.vmem %s1, %s338
      %p340 = pneg %p68
      %p341 = pneg %p65
      %p342 = pneg %p89
      %p343 = pneg %p86
      %p344 = pneg %p110
      %p345 = pneg %p107
      %p346 = pneg %p131
      %p347 = pneg %p128
      %p348 = pneg %p152
      %p349 = pneg %p149
      %p350 = pneg %p173
      %p351 = pneg %p170
      %p352 = pneg %p194
      %p353 = pneg %p191
      %p354 = pneg %p215
      %p355 = pneg %p212
      %p356 = pneg %p236
      %p357 = pneg %p233
      %p358 = pneg %p262
      %p359 = pneg %p259
      %p360 = scmp.lt.s32.totalorder %s21, 1
      %s361 = scalar_select %p360, %s21, 1
      %s362 = smul.addr %s361, 2
      %s363 = smul.addr %s362, 8
      %s364 = scalar_lea.vmem %s10, %s363
      %p365 = scmp.lt.s32.totalorder %s21, 1
      %s366 = scalar_select %p365, %s21, 1
      %s367 = smul.addr %s366, 4
      %s368 = smul.addr %s367, 8
      %s369 = scalar_lea.vmem %s0, %s368
      %p370 = scmp.lt.s32.totalorder %s21, 1
      %s371 = scalar_select %p370, %s21, 1
      %s372 = smul.addr %s371, 4
      %s373 = smul.addr %s372, 8
      %s374 = scalar_lea.vmem %s1, %s373
      %p375 = scmp.lt.s32.totalorder %s21, 1
      %s376 = scalar_select %p375, %s21, 1
      %s377 = smul.addr %s376, 2
      %s378 = smul.addr %s377, 8
      %s379 = scalar_lea.vmem %s10, %s378
      %v380 = vld [vmem:[%s374] sm:$0xff]
      %v381 = vld [vmem:[%s374 + $0x8] sm:$0xff]
      %v382 = vld [vmem:[%s374 + $0x10] sm:$0xff]
      %v383 = vld [vmem:[%s374 + $0x18] sm:$0xff]
      %v384 = vld [vmem:[%s2] sm:$0xff]
      %v385 = vld [vmem:[%s3] sm:$0x1]
      %v387 = vlaneseq
      %v388 = vshrl.u32 %v387, 7
      %v389 = vsub.s32 0, %v388
      %v390 = vrot.slane %v385, %v389
      %vm392 = vcmask 64512
      %v394 = vsel %vm392, %v380, 0
      %v397 = vsel %vm392, %v381, 0
      %v400 = vsel %vm392, %v382, 0
      %v403 = vsel %vm392, %v383, 0
      %405 = vmatprep.subr.mxu0 0.0
      %406 = vmatpush1.msra.mxu0 0.0
      %407 = vmatprep.subr.mxu0 0.0
      %408 = vmatpush1.msra.mxu0 0.0
      %409 = vmatprep.subr.mxu0 0.0
      %410 = vmatpush1.msra.mxu0 0.0
      %411 = vmatprep.subr.mxu0 0.0
      %412 = vmatpush1.msra.mxu0 0.0
      %413 = vmatprep.subr.mxu0 0.0
      %414 = vmatpush1.msra.mxu0 0.0
      %415 = vmatprep.subr.mxu0 0.0
      %416 = vmatpush1.msra.mxu0 0.0
      %417 = vmatprep.subr.mxu0 0.0
      %418 = vmatpush1.msra.mxu0 0.0
      %419 = vmatprep.subr.mxu0 0.0
      %420 = vmatpush1.msra.mxu0 0.0
      %421 = vmatprep.subr.mxu0 0.0
      %422 = vmatpush1.msra.mxu0 0.0
      %423 = vmatprep.subr.mxu0 0.0
      %424 = vmatpush1.msra.mxu0 0.0
      %425 = vmatprep.subr.mxu0 0.0
      %426 = vmatpush1.msra.mxu0 0.0
      %427 = vmatprep.subr.mxu0 0.0
      %428 = vmatpush1.msra.mxu0 0.0
      %429 = vmatprep.subr.mxu0 0.0
      %430 = vmatpush1.msra.mxu0 0.0
      %431 = vmatprep.subr.mxu0 0.0
      %432 = vmatpush1.msra.mxu0 0.0
      %433 = vmatprep.subr.mxu0 0.0
      %434 = vmatpush1.msra.mxu0 0.0
      %435 = vmatprep.subr.mxu0 0.0
      %436 = vmatpush1.msra.mxu0 %v384
      %437 = vmatprep.subr.mxu0 0.0
      %438 = vmatpush2.msra.mxu0 0.0
      %439 = vmatprep.subr.mxu0 0.0
      %440 = vmatpush2.msra.mxu0 0.0
      %441 = vmatprep.subr.mxu0 0.0
      %442 = vmatpush2.msra.mxu0 0.0
      %443 = vmatprep.subr.mxu0 0.0
      %444 = vmatpush2.msra.mxu0 0.0
      %445 = vmatprep.subr.mxu0 0.0
      %446 = vmatpush2.msra.mxu0 0.0
      %447 = vmatprep.subr.mxu0 0.0
      %448 = vmatpush2.msra.mxu0 0.0
      %449 = vmatprep.subr.mxu0 0.0
      %450 = vmatpush2.msra.mxu0 0.0
      %451 = vmatprep.subr.mxu0 0.0
      %452 = vmatpush2.msra.mxu0 0.0
      %453 = vmatprep.subr.mxu0 0.0
      %454 = vmatpush2.msra.mxu0 0.0
      %455 = vmatprep.subr.mxu0 0.0
      %456 = vmatpush2.msra.mxu0 0.0
      %457 = vmatprep.subr.mxu0 0.0
      %458 = vmatpush2.msra.mxu0 0.0
      %459 = vmatprep.subr.mxu0 0.0
      %460 = vmatpush2.msra.mxu0 0.0
      %461 = vmatprep.subr.mxu0 0.0
      %462 = vmatpush2.msra.mxu0 0.0
      %463 = vmatprep.subr.mxu0 0.0
      %464 = vmatpush2.msra.mxu0 0.0
      %465 = vmatprep.subr.mxu0 0.0
      %466 = vmatpush2.msra.mxu0 0.0
      %467 = vmatprep.subr.mxu0 0.0
      %468 = vmatpush2.msra.mxu0 0.0
      %469 = vmatprep.mubr.f32.mxu0 0.0
      %470 = vmatmul.mubr.f32.gmra.mxu0 %v394
      %v471 = vpop.f32.mrf.mxu0
      %v472 = vadd.f32 %v390, %v471
      %v473 = vpop.f32.mrf.mxu0
      %474 = vmatprep.mubr.f32.mxu0 0.0
      %475 = vmatmul.mubr.f32.gmra.mxu0 %v397
      %v476 = vpop.f32.mrf.mxu0
      %v477 = vadd.f32 %v390, %v476
      %v478 = vpop.f32.mrf.mxu0
      %479 = vmatprep.mubr.f32.mxu0 0.0
      %480 = vmatmul.mubr.f32.gmra.mxu0 %v400
      %v481 = vpop.f32.mrf.mxu0
      %v482 = vadd.f32 %v390, %v481
      %v483 = vpop.f32.mrf.mxu0
      %484 = vmatprep.mubr.f32.mxu0 0.0
      %485 = vmatmul.mubr.f32.gmra.mxu0 %v403
      %v486 = vpop.f32.mrf.mxu0
      %v487 = vadd.f32 %v390, %v486
      %v488 = vpop.f32.mrf.mxu0
      %489 = vdwg.mxu0
      %vm490 = vcmask 261120
      %v491 = vsel %vm490, %v472, 0.0
      %492 = vadd.xlane.f32.xlu0 %v491
      %v493 = vpop.xlane.xlu0 %492
      %v494 = vsel %vm490, %v477, 0.0
      %495 = vadd.xlane.f32.xlu0 %v494
      %v496 = vpop.xlane.xlu0 %495
      %v497 = vsel %vm490, %v482, 0.0
      %498 = vadd.xlane.f32.xlu0 %v497
      %v499 = vpop.xlane.xlu0 %498
      %v500 = vsel %vm490, %v487, 0.0
      %501 = vadd.xlane.f32.xlu0 %v500
      %v502 = vpop.xlane.xlu0 %501
      %v503 = vrcp.pop 32.0
      %v504 = vmul.f32 %v493, %v503
      %v505 = vmul.f32 %v496, %v503
      %v506 = vmul.f32 %v499, %v503
      %v507 = vmul.f32 %v502, %v503
      %v508 = vsub.f32 %v472, %v504
      %v509 = vsub.f32 %v477, %v505
      %v510 = vsub.f32 %v482, %v506
      %v511 = vsub.f32 %v487, %v507
      %v512 = vmul.f32 %v508, %v508
      %v513 = vmul.f32 %v509, %v509
      %v514 = vmul.f32 %v510, %v510
      %v515 = vmul.f32 %v511, %v511
      %v516 = vsel %vm490, %v512, 0.0
      %517 = vadd.xlane.f32.xlu0 %v516
      %v518 = vpop.xlane.xlu0 %517
      %v519 = vsel %vm490, %v513, 0.0
      %520 = vadd.xlane.f32.xlu0 %v519
      %v521 = vpop.xlane.xlu0 %520
      %v522 = vsel %vm490, %v514, 0.0
      %523 = vadd.xlane.f32.xlu0 %v522
      %v524 = vpop.xlane.xlu0 %523
      %v525 = vsel %vm490, %v515, 0.0
      %526 = vadd.xlane.f32.xlu0 %v525
      %v527 = vpop.xlane.xlu0 %526
      %v528 = vmul.f32 %v518, %v503
      %v529 = vmul.f32 %v521, %v503
      %v530 = vmul.f32 %v524, %v503
      %v531 = vmul.f32 %v527, %v503
      %v532 = vadd.f32 %v528, 1e-05
      %v533 = vadd.f32 %v529, 1e-05
      %v534 = vadd.f32 %v530, 1e-05
      %v535 = vadd.f32 %v531, 1e-05
      %v536 = vrsqrt.pop %v532
      %v537 = vrsqrt.pop %v533
      %v538 = vrsqrt.pop %v534
      %v539 = vrsqrt.pop %v535
      %v540 = vmul.f32 %v508, %v536
      %v541 = vmul.f32 %v509, %v537
      %v542 = vmul.f32 %v510, %v538
      %v543 = vmul.f32 %v511, %v539
      %v544 = vld [vmem:[%s4] sm:$0x1]
      %v546 = vlaneseq
      %v547 = vshrl.u32 %v546, 7
      %v548 = vsub.s32 0, %v547
      %v549 = vrot.slane %v544, %v548
      %v551 = vmul.f32 %v540, %v549
      %v552 = vmul.f32 %v541, %v549
      %v553 = vmul.f32 %v542, %v549
      %v554 = vmul.f32 %v543, %v549
      %v555 = vld [vmem:[%s5] sm:$0x1]
      %v557 = vlaneseq
      %v558 = vshrl.u32 %v557, 7
      %v559 = vsub.s32 0, %v558
      %v560 = vrot.slane %v555, %v559
      %v562 = vadd.f32 %v551, %v560
      %v563 = vadd.f32 %v552, %v560
      %v564 = vadd.f32 %v553, %v560
      %v565 = vadd.f32 %v554, %v560
      %v566 = vmax.f32 %v562, 0.0
      %v567 = vmax.f32 %v563, 0.0
      %v568 = vmax.f32 %v564, 0.0
      %v569 = vmax.f32 %v565, 0.0
      %v570 = vld [vmem:[%s369] sm:$0xff]
      %v571 = vld [vmem:[%s369 + $0x8] sm:$0xff]
      %v572 = vld [vmem:[%s369 + $0x10] sm:$0xff]
      %v573 = vld [vmem:[%s369 + $0x18] sm:$0xff]
      %v575 = vsel %vm490, %v570, 0
      %v578 = vsel %vm490, %v571, 0
      %v581 = vsel %vm490, %v572, 0
      %v584 = vsel %vm490, %v573, 0
      %586 = vmatprep.subr.mxu0 0.0
      %587 = vmatpush1.msra.mxu0 0.0
      %588 = vmatprep.subr.mxu0 0.0
      %589 = vmatpush1.msra.mxu0 0.0
      %590 = vmatprep.subr.mxu0 0.0
      %591 = vmatpush1.msra.mxu0 0.0
      %592 = vmatprep.subr.mxu0 0.0
      %593 = vmatpush1.msra.mxu0 0.0
      %594 = vmatprep.subr.mxu0 0.0
      %595 = vmatpush1.msra.mxu0 0.0
      %596 = vmatprep.subr.mxu0 0.0
      %597 = vmatpush1.msra.mxu0 0.0
      %598 = vmatprep.subr.mxu0 0.0
      %599 = vmatpush1.msra.mxu0 0.0
      %600 = vmatprep.subr.mxu0 0.0
      %601 = vmatpush1.msra.mxu0 0.0
      %602 = vmatprep.subr.mxu0 0.0
      %603 = vmatpush1.msra.mxu0 0.0
      %604 = vmatprep.subr.mxu0 0.0
      %605 = vmatpush1.msra.mxu0 0.0
      %606 = vmatprep.subr.mxu0 0.0
      %607 = vmatpush1.msra.mxu0 0.0
      %608 = vmatprep.subr.mxu0 0.0
      %609 = vmatpush1.msra.mxu0 0.0
      %610 = vmatprep.subr.mxu0 0.0
      %611 = vmatpush1.msra.mxu0 %v569
      %612 = vmatprep.subr.mxu0 0.0
      %613 = vmatpush1.msra.mxu0 %v568
      %614 = vmatprep.subr.mxu0 0.0
      %615 = vmatpush1.msra.mxu0 %v567
      %616 = vmatprep.subr.mxu0 0.0
      %617 = vmatpush1.msra.mxu0 %v566
      %618 = vmatprep.subr.mxu0 0.0
      %619 = vmatpush2.msra.mxu0 0.0
      %620 = vmatprep.subr.mxu0 0.0
      %621 = vmatpush2.msra.mxu0 0.0
      %622 = vmatprep.subr.mxu0 0.0
      %623 = vmatpush2.msra.mxu0 0.0
      %624 = vmatprep.subr.mxu0 0.0
      %625 = vmatpush2.msra.mxu0 0.0
      %626 = vmatprep.subr.mxu0 0.0
      %627 = vmatpush2.msra.mxu0 0.0
      %628 = vmatprep.subr.mxu0 0.0
      %629 = vmatpush2.msra.mxu0 0.0
      %630 = vmatprep.subr.mxu0 0.0
      %631 = vmatpush2.msra.mxu0 0.0
      %632 = vmatprep.subr.mxu0 0.0
      %633 = vmatpush2.msra.mxu0 0.0
      %634 = vmatprep.subr.mxu0 0.0
      %635 = vmatpush2.msra.mxu0 0.0
      %636 = vmatprep.subr.mxu0 0.0
      %637 = vmatpush2.msra.mxu0 0.0
      %638 = vmatprep.subr.mxu0 0.0
      %639 = vmatpush2.msra.mxu0 0.0
      %640 = vmatprep.subr.mxu0 0.0
      %641 = vmatpush2.msra.mxu0 0.0
      %642 = vmatprep.subr.mxu0 0.0
      %643 = vmatpush2.msra.mxu0 0.0
      %644 = vmatprep.subr.mxu0 0.0
      %645 = vmatpush2.msra.mxu0 0.0
      %646 = vmatprep.subr.mxu0 0.0
      %647 = vmatpush2.msra.mxu0 0.0
      %648 = vmatprep.subr.mxu0 0.0
      %649 = vmatpush2.msra.mxu0 0.0
      %650 = vmatprep.mubr.f32.mxu0 0.0
      %651 = vmatmul.mubr.f32.gmra.mxu0 %v575
      %v652 = vpop.f32.mrf.mxu0
      %v653 = vadd.f32 0.0, %v652
      %v654 = vpop.f32.mrf.mxu0
      %655 = vmatprep.mubr.f32.mxu0 0.0
      %656 = vmatmul.mubr.f32.gmra.mxu0 %v578
      %v657 = vpop.f32.mrf.mxu0
      %v658 = vadd.f32 0.0, %v657
      %v659 = vpop.f32.mrf.mxu0
      %660 = vmatprep.mubr.f32.mxu0 0.0
      %661 = vmatmul.mubr.f32.gmra.mxu0 %v581
      %v662 = vpop.f32.mrf.mxu0
      %v663 = vadd.f32 0.0, %v662
      %v664 = vpop.f32.mrf.mxu0
      %665 = vmatprep.mubr.f32.mxu0 0.0
      %666 = vmatmul.mubr.f32.gmra.mxu0 %v584
      %v667 = vpop.f32.mrf.mxu0
      %v668 = vadd.f32 0.0, %v667
      %v669 = vpop.f32.mrf.mxu0
      %670 = vdwg.mxu0
      %671 = vxpose.xlu0.b32.start [1/16] %v570, 128
      %672 = vxpose.xlu0.b32.cont [2/16] %v571, 128
      %673 = vxpose.xlu0.b32.cont [3/16] %v572, 128
      %674 = vxpose.xlu0.b32.cont [4/16] %v573, 128
      %675 = vxpose.xlu0.b32.cont [5/16] 0.0, 128
      %676 = vxpose.xlu0.b32.cont [6/16] 0.0, 128
      %677 = vxpose.xlu0.b32.cont [7/16] 0.0, 128
      %678 = vxpose.xlu0.b32.cont [8/16] 0.0, 128
      %679 = vxpose.xlu0.b32.cont [9/16] 0.0, 128
      %680 = vxpose.xlu0.b32.cont [10/16] 0.0, 128
      %681 = vxpose.xlu0.b32.cont [11/16] 0.0, 128
      %682 = vxpose.xlu0.b32.cont [12/16] 0.0, 128
      %683 = vxpose.xlu0.b32.cont [13/16] 0.0, 128
      %684 = vxpose.xlu0.b32.cont [14/16] 0.0, 128
      %685 = vxpose.xlu0.b32.cont [15/16] 0.0, 128
      %686 = vxpose.xlu0.b32.end [16/16] 0.0, 128
      %v687 = vpop.trf.xlu0
      %v688 = vpop.trf.xlu0
      %v689 = vpop.trf.xlu0
      %v690 = vpop.trf.xlu0
      %v691 = vpop.trf.xlu0
      %v692 = vpop.trf.xlu0
      %v693 = vpop.trf.xlu0
      %v694 = vpop.trf.xlu0
      %v695 = vpop.trf.xlu0
      %v696 = vpop.trf.xlu0
      %v697 = vpop.trf.xlu0
      %v698 = vpop.trf.xlu0
      %v699 = vpop.trf.xlu0
      %v700 = vpop.trf.xlu0
      %v701 = vpop.trf.xlu0
      %v702 = vpop.trf.xlu0
      %v704 = vsel %vm490, %v687, 0
      %v707 = vsel %vm490, %v688, 0
      %v710 = vsel %vm490, %v689, 0
      %v713 = vsel %vm490, %v690, 0
      %715 = vmatprep.subr.mxu0 0.0
      %716 = vmatpush1.msra.mxu0 0.0
      %717 = vmatprep.subr.mxu0 0.0
      %718 = vmatpush1.msra.mxu0 0.0
      %719 = vmatprep.subr.mxu0 0.0
      %720 = vmatpush1.msra.mxu0 0.0
      %721 = vmatprep.subr.mxu0 0.0
      %722 = vmatpush1.msra.mxu0 0.0
      %723 = vmatprep.subr.mxu0 0.0
      %724 = vmatpush1.msra.mxu0 0.0
      %725 = vmatprep.subr.mxu0 0.0
      %726 = vmatpush1.msra.mxu0 0.0
      %727 = vmatprep.subr.mxu0 0.0
      %728 = vmatpush1.msra.mxu0 0.0
      %729 = vmatprep.subr.mxu0 0.0
      %730 = vmatpush1.msra.mxu0 0.0
      %731 = vmatprep.subr.mxu0 0.0
      %732 = vmatpush1.msra.mxu0 0.0
      %733 = vmatprep.subr.mxu0 0.0
      %734 = vmatpush1.msra.mxu0 0.0
      %735 = vmatprep.subr.mxu0 0.0
      %736 = vmatpush1.msra.mxu0 0.0
      %737 = vmatprep.subr.mxu0 0.0
      %738 = vmatpush1.msra.mxu0 0.0
      %739 = vmatprep.subr.mxu0 0.0
      %740 = vmatpush1.msra.mxu0 %v668
      %741 = vmatprep.subr.mxu0 0.0
      %742 = vmatpush1.msra.mxu0 %v663
      %743 = vmatprep.subr.mxu0 0.0
      %744 = vmatpush1.msra.mxu0 %v658
      %745 = vmatprep.subr.mxu0 0.0
      %746 = vmatpush1.msra.mxu0 %v653
      %747 = vmatprep.subr.mxu0 0.0
      %748 = vmatpush2.msra.mxu0 0.0
      %749 = vmatprep.subr.mxu0 0.0
      %750 = vmatpush2.msra.mxu0 0.0
      %751 = vmatprep.subr.mxu0 0.0
      %752 = vmatpush2.msra.mxu0 0.0
      %753 = vmatprep.subr.mxu0 0.0
      %754 = vmatpush2.msra.mxu0 0.0
      %755 = vmatprep.subr.mxu0 0.0
      %756 = vmatpush2.msra.mxu0 0.0
      %757 = vmatprep.subr.mxu0 0.0
      %758 = vmatpush2.msra.mxu0 0.0
      %759 = vmatprep.subr.mxu0 0.0
      %760 = vmatpush2.msra.mxu0 0.0
      %761 = vmatprep.subr.mxu0 0.0
      %762 = vmatpush2.msra.mxu0 0.0
      %763 = vmatprep.subr.mxu0 0.0
      %764 = vmatpush2.msra.mxu0 0.0
      %765 = vmatprep.subr.mxu0 0.0
      %766 = vmatpush2.msra.mxu0 0.0
      %767 = vmatprep.subr.mxu0 0.0
      %768 = vmatpush2.msra.mxu0 0.0
      %769 = vmatprep.subr.mxu0 0.0
      %770 = vmatpush2.msra.mxu0 0.0
      %771 = vmatprep.subr.mxu0 0.0
      %772 = vmatpush2.msra.mxu0 0.0
      %773 = vmatprep.subr.mxu0 0.0
      %774 = vmatpush2.msra.mxu0 0.0
      %775 = vmatprep.subr.mxu0 0.0
      %776 = vmatpush2.msra.mxu0 0.0
      %777 = vmatprep.subr.mxu0 0.0
      %778 = vmatpush2.msra.mxu0 0.0
      %779 = vmatprep.mubr.f32.mxu0 0.0
      %780 = vmatmul.mubr.f32.gmra.mxu0 %v704
      %v781 = vpop.f32.mrf.mxu0
      %v782 = vadd.f32 0.0, %v781
      %v783 = vpop.f32.mrf.mxu0
      %784 = vmatprep.mubr.f32.mxu0 0.0
      %785 = vmatmul.mubr.f32.gmra.mxu0 %v707
      %v786 = vpop.f32.mrf.mxu0
      %v787 = vadd.f32 0.0, %v786
      %v788 = vpop.f32.mrf.mxu0
      %789 = vmatprep.mubr.f32.mxu0 0.0
      %790 = vmatmul.mubr.f32.gmra.mxu0 %v710
      %v791 = vpop.f32.mrf.mxu0
      %v792 = vadd.f32 0.0, %v791
      %v793 = vpop.f32.mrf.mxu0
      %794 = vmatprep.mubr.f32.mxu0 0.0
      %795 = vmatmul.mubr.f32.gmra.mxu0 %v713
      %v796 = vpop.f32.mrf.mxu0
      %v797 = vadd.f32 0.0, %v796
      %v798 = vpop.f32.mrf.mxu0
      %799 = vdwg.mxu0
      %800 = vst.msk [vmem:[#allocation2] sm:$0xff] %vm490, %v782
      %801 = vst.msk [vmem:[#allocation2 + $0x8] sm:$0xff] %vm490, %v787
      %804 = vrot.lane.b32.xlu0 %v792, 32
      %v805 = vpop.permute.xlu0 %804
      %806 = vrot.lane.b32.xlu0 %v797, 32
      %v807 = vpop.permute.xlu0 %806
      %vm810 = vcmask 523520
      %811 = vst.msk [vmem:[#allocation2] sm:$0xff] %vm810, %v805
      %812 = vst.msk [vmem:[#allocation2 + $0x8] sm:$0xff] %vm810, %v807
      %v813 = vld [vmem:[#allocation2] sm:$0xff]
      %v814 = vld [vmem:[#allocation2 + $0x8] sm:$0xff]
      %vm815 = vcmask 523264
      %v816 = vsel %vm815, %v813, 0.0
      %817 = vadd.xlane.f32.xlu0 %v816
      %v818 = vpop.xlane.xlu0 %817
      %v819 = vsel %vm815, %v814, 0.0
      %820 = vadd.xlane.f32.xlu0 %v819
      %v821 = vpop.xlane.xlu0 %820
      %v822 = vrcp.pop 64.0
      %v823 = vmul.f32 %v818, %v822
      %v824 = vmul.f32 %v821, %v822
      %v825 = vsub.f32 %v813, %v823
      %v826 = vsub.f32 %v814, %v824
      %v827 = vmul.f32 %v825, %v825
      %v828 = vmul.f32 %v826, %v826
      %v829 = vsel %vm815, %v827, 0.0
      %830 = vadd.xlane.f32.xlu0 %v829
      %v831 = vpop.xlane.xlu0 %830
      %v832 = vsel %vm815, %v828, 0.0
      %833 = vadd.xlane.f32.xlu0 %v832
      %v834 = vpop.xlane.xlu0 %833
      %v835 = vmul.f32 %v831, %v822
      %v836 = vmul.f32 %v834, %v822
      %v837 = vadd.f32 %v835, 1e-05
      %v838 = vadd.f32 %v836, 1e-05
      %v839 = vrsqrt.pop %v837
      %v840 = vrsqrt.pop %v838
      %v841 = vmul.f32 %v825, %v839
      %v842 = vmul.f32 %v826, %v840
      %v843 = vld [vmem:[%s6] sm:$0x1]
      %v845 = vlaneseq
      %v846 = vshrl.u32 %v845, 7
      %v847 = vsub.s32 0, %v846
      %v848 = vrot.slane %v843, %v847
      %v850 = vmul.f32 %v841, %v848
      %v851 = vmul.f32 %v842, %v848
      %v852 = vld [vmem:[%s7] sm:$0x1]
      %v854 = vlaneseq
      %v855 = vshrl.u32 %v854, 7
      %v856 = vsub.s32 0, %v855
      %v857 = vrot.slane %v852, %v856
      %v859 = vadd.f32 %v850, %v857
      %v860 = vadd.f32 %v851, %v857
      %v861 = vld [vmem:[%s8] sm:$0xff]
      %v862 = vld [vmem:[%s8 + $0x8] sm:$0xff]
      %v863 = vld [vmem:[%s8 + $0x10] sm:$0xff]
      %v864 = vld [vmem:[%s8 + $0x18] sm:$0xff]
      %v865 = vld [vmem:[%s8 + $0x20] sm:$0xff]
      %v866 = vld [vmem:[%s8 + $0x28] sm:$0xff]
      %v867 = vld [vmem:[%s8 + $0x30] sm:$0xff]
      %v868 = vld [vmem:[%s8 + $0x38] sm:$0xff]
      %v869 = vld [vmem:[%s9] sm:$0x1]
      %v871 = vlaneseq
      %v872 = vshrl.u32 %v871, 7
      %v873 = vsub.s32 0, %v872
      %v874 = vrot.slane %v869, %v873
      %v877 = vsel %vm815, %v859, 0
      %v880 = vsel %vm815, %v860, 0
      %882 = vmatprep.subr.mxu0 0.0
      %883 = vmatpush1.msra.mxu0 0.0
      %884 = vmatprep.subr.mxu0 0.0
      %885 = vmatpush1.msra.mxu0 0.0
      %886 = vmatprep.subr.mxu0 0.0
      %887 = vmatpush1.msra.mxu0 0.0
      %888 = vmatprep.subr.mxu0 0.0
      %889 = vmatpush1.msra.mxu0 0.0
      %890 = vmatprep.subr.mxu0 0.0
      %891 = vmatpush1.msra.mxu0 0.0
      %892 = vmatprep.subr.mxu0 0.0
      %893 = vmatpush1.msra.mxu0 0.0
      %894 = vmatprep.subr.mxu0 0.0
      %895 = vmatpush1.msra.mxu0 0.0
      %896 = vmatprep.subr.mxu0 0.0
      %897 = vmatpush1.msra.mxu0 0.0
      %898 = vmatprep.subr.mxu0 0.0
      %899 = vmatpush1.msra.mxu0 %v868
      %900 = vmatprep.subr.mxu0 0.0
      %901 = vmatpush1.msra.mxu0 %v867
      %902 = vmatprep.subr.mxu0 0.0
      %903 = vmatpush1.msra.mxu0 %v866
      %904 = vmatprep.subr.mxu0 0.0
      %905 = vmatpush1.msra.mxu0 %v865
      %906 = vmatprep.subr.mxu0 0.0
      %907 = vmatpush1.msra.mxu0 %v864
      %908 = vmatprep.subr.mxu0 0.0
      %909 = vmatpush1.msra.mxu0 %v863
      %910 = vmatprep.subr.mxu0 0.0
      %911 = vmatpush1.msra.mxu0 %v862
      %912 = vmatprep.subr.mxu0 0.0
      %913 = vmatpush1.msra.mxu0 %v861
      %914 = vmatprep.subr.mxu0 0.0
      %915 = vmatpush2.msra.mxu0 0.0
      %916 = vmatprep.subr.mxu0 0.0
      %917 = vmatpush2.msra.mxu0 0.0
      %918 = vmatprep.subr.mxu0 0.0
      %919 = vmatpush2.msra.mxu0 0.0
      %920 = vmatprep.subr.mxu0 0.0
      %921 = vmatpush2.msra.mxu0 0.0
      %922 = vmatprep.subr.mxu0 0.0
      %923 = vmatpush2.msra.mxu0 0.0
      %924 = vmatprep.subr.mxu0 0.0
      %925 = vmatpush2.msra.mxu0 0.0
      %926 = vmatprep.subr.mxu0 0.0
      %927 = vmatpush2.msra.mxu0 0.0
      %928 = vmatprep.subr.mxu0 0.0
      %929 = vmatpush2.msra.mxu0 0.0
      %930 = vmatprep.subr.mxu0 0.0
      %931 = vmatpush2.msra.mxu0 0.0
      %932 = vmatprep.subr.mxu0 0.0
      %933 = vmatpush2.msra.mxu0 0.0
      %934 = vmatprep.subr.mxu0 0.0
      %935 = vmatpush2.msra.mxu0 0.0
      %936 = vmatprep.subr.mxu0 0.0
      %937 = vmatpush2.msra.mxu0 0.0
      %938 = vmatprep.subr.mxu0 0.0
      %939 = vmatpush2.msra.mxu0 0.0
      %940 = vmatprep.subr.mxu0 0.0
      %941 = vmatpush2.msra.mxu0 0.0
      %942 = vmatprep.subr.mxu0 0.0
      %943 = vmatpush2.msra.mxu0 0.0
      %944 = vmatprep.subr.mxu0 0.0
      %945 = vmatpush2.msra.mxu0 0.0
      %946 = vmatprep.mubr.f32.mxu0 0.0
      %947 = vmatmul.mubr.f32.gmra.mxu0 %v877
      %v948 = vpop.f32.mrf.mxu0
      %v949 = vadd.f32 %v874, %v948
      %v950 = vpop.f32.mrf.mxu0
      %951 = vmatprep.mubr.f32.mxu0 0.0
      %952 = vmatmul.mubr.f32.gmra.mxu0 %v880
      %v953 = vpop.f32.mrf.mxu0
      %v954 = vadd.f32 %v874, %v953
      %v955 = vpop.f32.mrf.mxu0
      %956 = vdwg.mxu0
      %vm957 = vcmask 23552
      %958 = vst.msk [vmem:[%s379] sm:$0xff] %vm957, %v949
      %959 = vst.msk [vmem:[%s379 + $0x8] sm:$0xff] %vm957, %v954
      %p960 = scmp.lt.s32.totalorder %s21, 1
      %s961 = scalar_select %p960, %s21, 1
      %s962 = smul.addr %s961, 2
      %s963 = smul.addr %s962, 8
      %s964 = scalar_lea.vmem %s10, %s963
      // Predicated region
      $region61: #{tpu_custom_call.1} parent=59 // pred_check
        %p965 = pneg %p259
      $region62: #{tpu_custom_call.1} parent=59 // pred_check_branch
        %967 = sbr.rel (%p965) target = $region64
      $region63: #{tpu_custom_call.1} parent=59 // pred_region
        _
      $region64: #{tpu_custom_call.1} parent=59 // pred_fallthru
        _
    $region60: #{tpu_custom_call.1} parent=5 // pred_fallthru
      _
    %p968 = scmp.le.s32.totalorder 2, %s16
    // Predicated region
    $region65: #{tpu_custom_call.1} parent=5 // pred_check
      %p969 = pneg %p968
    $region66: #{tpu_custom_call.1} parent=5 // pred_check_branch
      %971 = sbr.rel (%p969) target = $region68
    $region67: #{tpu_custom_call.1} parent=5 // pred_region
      %s972 = ssub.s32 %s16, 2
      // Predicated region
      $region69: #{tpu_custom_call.1} parent=67 // pred_check
        %p973 = pneg %p265
      $region70: #{tpu_custom_call.1} parent=67 // pred_check_branch
        %975 = sbr.rel (%p973) target = $region72
      $region71: #{tpu_custom_call.1} parent=67 // pred_region
        %p976 = scmp.lt.s32.totalorder %s22, 1
        %s977 = scalar_select %p976, %s22, 1
        %s978 = smul.addr %s977, 2
        %s979 = smul.addr %s978, 8
        %s980 = scalar_lea.vmem %s10, %s979
      $region72: #{tpu_custom_call.1} parent=67 // pred_fallthru
        _
    $region68: #{tpu_custom_call.1} parent=5 // pred_fallthru
      _
  $region6: #{tpu_custom_call.1} parent=0 // loop_footer
    %s20 = sadd.s32 1, %s16
  $region7: #{tpu_custom_call.1} parent=0 // loop_footer_branch
    %15 = sbr.rel target = $region3
  $region8: #{tpu_custom_call.1} parent=0 // loop_exit
    _

</llo_original>
